<compile_context>
chip_gen: v7x
topology: tpu7x:2x2x1
jax: 0.10.0
libtpu: 0.0.40
codegen_flags: <defaults>
</compile_context>

<pallas_src>
import functools
import math

import numpy as np
import jax
import jax.numpy as jnp
from jax.experimental import pallas as pl
from jax.experimental.pallas import tpu as pltpu

_GRAY_R, _GRAY_G, _GRAY_B = 0.2989, 0.5870, 0.1140   # torchvision rgb_to_grayscale
_LOG2 = math.log(2.0)                                 # BCE-with-logits at z = 0
_SOFTPLUS_NEG1 = math.log1p(math.exp(-1.0))           # log(1 + e^-1): BCE tail at z = 1


def _edge_bce_kernel(pred_ref, gt_ref, out_ref, *, th_edges):
    """Fused EdgeLoss forward.

    pred_ref : (B, 3, H, W) VMEM  -- RGB prediction (any float dtype)
    gt_ref   : (B, H, W)    VMEM  -- ground-truth edge map (channel squeezed)
    out_ref  : (1,)         f32 SMEM -- sum of per-pixel BCE-with-logits terms
    """
    B, C, H, W = pred_ref.shape
    x = pred_ref[...].astype(jnp.float32)
    y = gt_ref[...].astype(jnp.float32)                                # (B, H, W)

    # rgb_to_grayscale (ITU-R 601 weights, same as torchvision).
    gray = _GRAY_R * x[:, 0] + _GRAY_G * x[:, 1] + _GRAY_B * x[:, 2]   # (B, H, W)

    # Hoisted boundary masks: built once, reused by all shift directions.
    rows = jax.lax.broadcasted_iota(jnp.int32, (B, H, W), 1)
    cols = jax.lax.broadcasted_iota(jnp.int32, (B, H, W), 2)
    has_up = rows >= 1          # pixel above exists
    has_dn = rows <= H - 2      # pixel below exists
    has_lf = cols >= 1          # pixel to the left exists
    has_rt = cols <= W - 2      # pixel to the right exists

    def up(t):     # t[i-1, j], zero outside the image
        return jnp.where(has_up, pltpu.roll(t, shift=1, axis=1), 0.0)

    def down(t):   # t[i+1, j]
        return jnp.where(has_dn, pltpu.roll(t, shift=H - 1, axis=1), 0.0)

    def left(t):   # t[i, j-1]
        return jnp.where(has_lf, pltpu.roll(t, shift=1, axis=2), 0.0)

    def right(t):  # t[i, j+1]
        return jnp.where(has_rt, pltpu.roll(t, shift=W - 1, axis=2), 0.0)

    # Separable zero-padded 3x3 Sobel:
    #   gx = [1,2,1]^T (rows) * [-1,0,+1] (cols);  gy = [-1,0,+1]^T * [1,2,1].
    sr = up(gray) + 2.0 * gray + down(gray)      # vertical [1,2,1] smoothing
    sc = left(gray) + 2.0 * gray + right(gray)   # horizontal [1,2,1] smoothing
    gx = right(sr) - left(sr)
    gy = down(sc) - up(sc)
    mag2 = gx * gx + gy * gy

    if th_edges != -1:
        # Thresholded edge map => logits are exactly {0, 1}: BCE folds to
        # constants (exact), and for th >= 0 the sqrt can be skipped entirely.
        if th_edges >= 0:
            m = mag2 > (th_edges * th_edges)
        else:
            m = jnp.sqrt(mag2) > th_edges
        bce = jnp.where(m, (1.0 - y) + _SOFTPLUS_NEG1, _LOG2)
    else:
        # Raw edge magnitudes as logits: stable softplus form.
        z = jnp.sqrt(mag2)
        bce = jnp.maximum(z, 0.0) - z * y + jnp.log1p(jnp.exp(-jnp.abs(z)))

    out_ref[0] = jnp.sum(bce)


class EdgeLoss:
    """Pallas port of EdgeLoss.  ti_pred: [B, 3, H, W] RGB; e_gt: [B, 1, H, W]."""

    def __init__(self, th_edges=0.1):
        self.th_edges = float(th_edges)

    def __call__(self, ti_pred, e_gt):
        B, C, H, W = ti_pred.shape
        assert C == 3, "EdgeLoss expects an RGB prediction"
        # Squeeze the gt channel outside the kernel; do NOT pre-cast to f32 —
        # the DMA moves the native dtype and the kernel casts on-chip.
        gt = e_gt[:, 0] if e_gt.ndim == 4 else e_gt

        total = pl.pallas_call(
            functools.partial(_edge_bce_kernel, th_edges=self.th_edges),
            out_shape=jax.ShapeDtypeStruct((1,), jnp.float32),
            grid=(1,),
            in_specs=[
                pl.BlockSpec((B, C, H, W), lambda i: (0, 0, 0, 0)),
                pl.BlockSpec((B, H, W), lambda i: (0, 0, 0)),
            ],
            out_specs=pl.BlockSpec(memory_space=pltpu.MemorySpace.SMEM),
            compiler_params=pltpu.CompilerParams(
                dimension_semantics=("arbitrary",)),
        )(ti_pred, gt)

        return total[0] / jnp.float32(B * H * W)   # mean over B*1*H*W elements


def _reference_loss(ti_pred, e_gt, th_edges=0.1):
    """Plain-JAX reference of the same math (zero-padded Sobel + full BCE)."""
    x = ti_pred.astype(jnp.float32)
    gray = _GRAY_R * x[:, 0] + _GRAY_G * x[:, 1] + _GRAY_B * x[:, 2]
    B, H, W = gray.shape
    gp = jnp.pad(gray, ((0, 0), (1, 1), (1, 1)))

    def win(di, dj):
        return gp[:, 1 + di:1 + di + H, 1 + dj:1 + dj + W]

    gx = (win(-1, 1) + 2.0 * win(0, 1) + win(1, 1)) - \
         (win(-1, -1) + 2.0 * win(0, -1) + win(1, -1))
    gy = (win(1, -1) + 2.0 * win(1, 0) + win(1, 1)) - \
         (win(-1, -1) + 2.0 * win(-1, 0) + win(-1, 1))
    edge = jnp.sqrt(gx * gx + gy * gy)
    z = jnp.where(edge > th_edges, 1.0, 0.0) if th_edges != -1 else edge
    y = e_gt.astype(jnp.float32)[:, 0]
    bce = jnp.maximum(z, 0.0) - z * y + jnp.log(1.0 + jnp.exp(-jnp.abs(z)))
    return jnp.mean(bce)


if __name__ == "__main__":
    # Small shapes consistent with the forward: RGB prediction and a 1-channel
    # binary edge ground truth of the same spatial size.  W = 128 keeps the
    # minor dim lane-dense (full 128-lane vregs).
    B, C, H, W = 2, 3, 16, 128

    key = jax.random.PRNGKey(0)
    k1, k2 = jax.random.split(key)
    ti_pred = jax.random.uniform(k1, (B, C, H, W), dtype=jnp.float32)
    e_gt = (jax.random.uniform(k2, (B, 1, H, W)) > 0.5).astype(jnp.float32)

    loss_mod = EdgeLoss(th_edges=0.1)
    loss = jax.block_until_ready(loss_mod(ti_pred, e_gt))

    ref = jax.block_until_ready(_reference_loss(ti_pred, e_gt, th_edges=0.1))
    assert np.isfinite(float(loss))
    np.testing.assert_allclose(float(loss), float(ref), rtol=1e-4, atol=1e-5)

    print("KERNEL_OK")
</pallas_src>

<mosaic_0001>
module attributes {stable_mosaic.version = 11 : i64} {
  func.func @_edge_bce_kernel(%arg0: i32, %arg1: memref<2x3x16x128xf32, #tpu.memory_space<vmem>>, %arg2: memref<2x16x128xf32, #tpu.memory_space<vmem>>, %arg3: memref<1xf32, #tpu.memory_space<smem>>) attributes {dimension_semantics = [#tpu.dimension_semantics<arbitrary>], iteration_bounds = array<i64: 1>, scalar_prefetch = 0 : i64, scratch_operands = 0 : i64, tpu.core_type = #tpu.core_type<tc>, window_params = [{pipeline_mode = #tpu.pipeline_mode<synchronous>, transform_indices = @transform_0, window_bounds = array<i64: 2, 3, 16, 128>}, {pipeline_mode = #tpu.pipeline_mode<synchronous>, transform_indices = @transform_1, window_bounds = array<i64: 2, 16, 128>}, {transform_indices = @transform_2, window_bounds = array<i64: 1>}]} {
    %c0 = arith.constant 0 : index
    %c0_0 = arith.constant 0 : index
    %c0_1 = arith.constant 0 : index
    %c0_2 = arith.constant 0 : index
    %0 = vector.load %arg1[%c0, %c0_0, %c0_1, %c0_2] : memref<2x3x16x128xf32, #tpu.memory_space<vmem>>, vector<2x3x16x128xf32>
    %c0_3 = arith.constant 0 : index
    %c0_4 = arith.constant 0 : index
    %c0_5 = arith.constant 0 : index
    %1 = vector.load %arg2[%c0_3, %c0_4, %c0_5] : memref<2x16x128xf32, #tpu.memory_space<vmem>>, vector<2x16x128xf32>
    %2 = vector.extract_strided_slice %0 {offsets = [0, 0, 0, 0], sizes = [2, 1, 16, 128], strides = [1, 1, 1, 1]} : vector<2x3x16x128xf32> to vector<2x1x16x128xf32>
    %3 = vector.shape_cast %2 : vector<2x1x16x128xf32> to vector<2x16x128xf32>
    %cst = arith.constant 2.989000e-01 : f32
    %4 = vector.broadcast %cst : f32 to vector<2x16x128xf32>
    %5 = arith.mulf %4, %3 : vector<2x16x128xf32>
    %6 = vector.extract_strided_slice %0 {offsets = [0, 1, 0, 0], sizes = [2, 1, 16, 128], strides = [1, 1, 1, 1]} : vector<2x3x16x128xf32> to vector<2x1x16x128xf32>
    %7 = vector.shape_cast %6 : vector<2x1x16x128xf32> to vector<2x16x128xf32>
    %cst_6 = arith.constant 5.870000e-01 : f32
    %8 = vector.broadcast %cst_6 : f32 to vector<2x16x128xf32>
    %9 = arith.mulf %8, %7 : vector<2x16x128xf32>
    %10 = arith.addf %5, %9 : vector<2x16x128xf32>
    %11 = vector.extract_strided_slice %0 {offsets = [0, 2, 0, 0], sizes = [2, 1, 16, 128], strides = [1, 1, 1, 1]} : vector<2x3x16x128xf32> to vector<2x1x16x128xf32>
    %12 = vector.shape_cast %11 : vector<2x1x16x128xf32> to vector<2x16x128xf32>
    %cst_7 = arith.constant 1.140000e-01 : f32
    %13 = vector.broadcast %cst_7 : f32 to vector<2x16x128xf32>
    %14 = arith.mulf %13, %12 : vector<2x16x128xf32>
    %15 = arith.addf %10, %14 : vector<2x16x128xf32>
    %16 = tpu.iota {dimensions = array<i32: 1>} : vector<2x16x128xi32>
    %17 = tpu.iota {dimensions = array<i32: 2>} : vector<2x16x128xi32>
    %c1_i32 = arith.constant 1 : i32
    %18 = vector.broadcast %c1_i32 : i32 to vector<2x16x128xi32>
    %19 = arith.cmpi sge, %16, %18 : vector<2x16x128xi32>
    %c14_i32 = arith.constant 14 : i32
    %20 = vector.broadcast %c14_i32 : i32 to vector<2x16x128xi32>
    %21 = arith.cmpi sle, %16, %20 : vector<2x16x128xi32>
    %c1_i32_8 = arith.constant 1 : i32
    %22 = vector.broadcast %c1_i32_8 : i32 to vector<2x16x128xi32>
    %23 = arith.cmpi sge, %17, %22 : vector<2x16x128xi32>
    %c126_i32 = arith.constant 126 : i32
    %24 = vector.broadcast %c126_i32 : i32 to vector<2x16x128xi32>
    %25 = arith.cmpi sle, %17, %24 : vector<2x16x128xi32>
    %c1_i32_9 = arith.constant 1 : i32
    %26 = tpu.dynamic_rotate %15 by %c1_i32_9 dim 1 : vector<2x16x128xf32>, i32 -> vector<2x16x128xf32>
    %cst_10 = arith.constant 0.000000e+00 : f32
    %27 = vector.broadcast %cst_10 : f32 to vector<2x16x128xf32>
    %28 = arith.select %19, %26, %27 : vector<2x16x128xi1>, vector<2x16x128xf32>
    %cst_11 = arith.constant 2.000000e+00 : f32
    %29 = vector.broadcast %cst_11 : f32 to vector<2x16x128xf32>
    %30 = arith.mulf %29, %15 : vector<2x16x128xf32>
    %31 = arith.addf %28, %30 : vector<2x16x128xf32>
    %c15_i32 = arith.constant 15 : i32
    %32 = tpu.dynamic_rotate %15 by %c15_i32 dim 1 : vector<2x16x128xf32>, i32 -> vector<2x16x128xf32>
    %cst_12 = arith.constant 0.000000e+00 : f32
    %33 = vector.broadcast %cst_12 : f32 to vector<2x16x128xf32>
    %34 = arith.select %21, %32, %33 : vector<2x16x128xi1>, vector<2x16x128xf32>
    %35 = arith.addf %31, %34 : vector<2x16x128xf32>
    %c1_i32_13 = arith.constant 1 : i32
    %36 = tpu.dynamic_rotate %15 by %c1_i32_13 dim 2 : vector<2x16x128xf32>, i32 -> vector<2x16x128xf32>
    %cst_14 = arith.constant 0.000000e+00 : f32
    %37 = vector.broadcast %cst_14 : f32 to vector<2x16x128xf32>
    %38 = arith.select %23, %36, %37 : vector<2x16x128xi1>, vector<2x16x128xf32>
    %cst_15 = arith.constant 2.000000e+00 : f32
    %39 = vector.broadcast %cst_15 : f32 to vector<2x16x128xf32>
    %40 = arith.mulf %39, %15 : vector<2x16x128xf32>
    %41 = arith.addf %38, %40 : vector<2x16x128xf32>
    %c127_i32 = arith.constant 127 : i32
    %42 = tpu.dynamic_rotate %15 by %c127_i32 dim 2 : vector<2x16x128xf32>, i32 -> vector<2x16x128xf32>
    %cst_16 = arith.constant 0.000000e+00 : f32
    %43 = vector.broadcast %cst_16 : f32 to vector<2x16x128xf32>
    %44 = arith.select %25, %42, %43 : vector<2x16x128xi1>, vector<2x16x128xf32>
    %45 = arith.addf %41, %44 : vector<2x16x128xf32>
    %c127_i32_17 = arith.constant 127 : i32
    %46 = tpu.dynamic_rotate %35 by %c127_i32_17 dim 2 : vector<2x16x128xf32>, i32 -> vector<2x16x128xf32>
    %cst_18 = arith.constant 0.000000e+00 : f32
    %47 = vector.broadcast %cst_18 : f32 to vector<2x16x128xf32>
    %48 = arith.select %25, %46, %47 : vector<2x16x128xi1>, vector<2x16x128xf32>
    %c1_i32_19 = arith.constant 1 : i32
    %49 = tpu.dynamic_rotate %35 by %c1_i32_19 dim 2 : vector<2x16x128xf32>, i32 -> vector<2x16x128xf32>
    %cst_20 = arith.constant 0.000000e+00 : f32
    %50 = vector.broadcast %cst_20 : f32 to vector<2x16x128xf32>
    %51 = arith.select %23, %49, %50 : vector<2x16x128xi1>, vector<2x16x128xf32>
    %52 = arith.subf %48, %51 : vector<2x16x128xf32>
    %c15_i32_21 = arith.constant 15 : i32
    %53 = tpu.dynamic_rotate %45 by %c15_i32_21 dim 1 : vector<2x16x128xf32>, i32 -> vector<2x16x128xf32>
    %cst_22 = arith.constant 0.000000e+00 : f32
    %54 = vector.broadcast %cst_22 : f32 to vector<2x16x128xf32>
    %55 = arith.select %21, %53, %54 : vector<2x16x128xi1>, vector<2x16x128xf32>
    %c1_i32_23 = arith.constant 1 : i32
    %56 = tpu.dynamic_rotate %45 by %c1_i32_23 dim 1 : vector<2x16x128xf32>, i32 -> vector<2x16x128xf32>
    %cst_24 = arith.constant 0.000000e+00 : f32
    %57 = vector.broadcast %cst_24 : f32 to vector<2x16x128xf32>
    %58 = arith.select %19, %56, %57 : vector<2x16x128xi1>, vector<2x16x128xf32>
    %59 = arith.subf %55, %58 : vector<2x16x128xf32>
    %60 = arith.mulf %52, %52 : vector<2x16x128xf32>
    %61 = arith.mulf %59, %59 : vector<2x16x128xf32>
    %62 = arith.addf %60, %61 : vector<2x16x128xf32>
    %cst_25 = arith.constant 0.00999999977 : f32
    %63 = vector.broadcast %cst_25 : f32 to vector<2x16x128xf32>
    %64 = arith.cmpf ogt, %62, %63 : vector<2x16x128xf32>
    %cst_26 = arith.constant 1.000000e+00 : f32
    %65 = vector.broadcast %cst_26 : f32 to vector<2x16x128xf32>
    %66 = arith.subf %65, %1 : vector<2x16x128xf32>
    %cst_27 = arith.constant 0.313261688 : f32
    %67 = vector.broadcast %cst_27 : f32 to vector<2x16x128xf32>
    %68 = arith.addf %66, %67 : vector<2x16x128xf32>
    %cst_28 = arith.constant 0.693147182 : f32
    %69 = vector.broadcast %cst_28 : f32 to vector<2x16x128xf32>
    %70 = arith.select %64, %68, %69 : vector<2x16x128xi1>, vector<2x16x128xf32>
    %71 = vector.shape_cast %70 : vector<2x16x128xf32> to vector<1x2x16x128xf32>
    %cst_29 = arith.constant dense<0.000000e+00> : vector<1xf32>
    %72 = vector.multi_reduction <add>, %71, %cst_29 [1, 2, 3] : vector<1x2x16x128xf32> to vector<1xf32>
    %73 = vector.shape_cast %72 : vector<1xf32> to vector<1x1x1x1xf32>
    %74 = vector.extract %73[0, 0, 0, 0] : f32 from vector<1x1x1x1xf32>
    %c0_30 = arith.constant 0 : index
    %75 = memref.load %arg3[%c0_30] : memref<1xf32, #tpu.memory_space<smem>>
    memref.store %74, %arg3[%c0_30] : memref<1xf32, #tpu.memory_space<smem>>
    return
  }
  func.func @transform_0(%arg0: i32) -> (i32, i32, i32, i32) {
    %c0_i32 = arith.constant 0 : i32
    %c0_i32_0 = arith.constant 0 : i32
    %c0_i32_1 = arith.constant 0 : i32
    %c0_i32_2 = arith.constant 0 : i32
    %c0_i32_3 = arith.constant 0 : i32
    return %c0_i32, %c0_i32_0, %c0_i32_1, %c0_i32_2 : i32, i32, i32, i32
  }
  func.func @transform_1(%arg0: i32) -> (i32, i32, i32) {
    %c0_i32 = arith.constant 0 : i32
    %c0_i32_0 = arith.constant 0 : i32
    %c0_i32_1 = arith.constant 0 : i32
    %c0_i32_2 = arith.constant 0 : i32
    return %c0_i32, %c0_i32_0, %c0_i32_1 : i32, i32, i32
  }
  func.func @transform_2(%arg0: i32) -> i32 {
    %c0_i32 = arith.constant 0 : i32
    %c0_i32_0 = arith.constant 0 : i32
    return %c0_i32 : i32
  }
}

</mosaic_0001>

<llo_original>
// kernel: tpu_custom_call.1
$region0: #{tpu_custom_call.1}
  #allocation0 [shape = 'u32[]', space=smem, size = 0x4, offset = 0x4, fixed_abs, tag = 'smem constant byte address 0x4 - core index']
  #allocation1 [shape = 'u32[144,128]{1,0:T(1,128)}', space=vmem, size = 0x12000, scoped, tag = 'internal scratch']
  %s0 = inlined_call_operand.hbm [shape: f32[2,3,16,128], index: 0, kind: input, shape index: {}]
  %s1 = inlined_call_operand.hbm [shape: f32[2,16,128], index: 1, kind: input, shape index: {}]
  %s2 = inlined_call_operand.hbm [shape: f32[1], index: 2, kind: output, shape index: {}]
  %s3 = sld [smem:[#allocation0]]
  $region26: #{tpu_custom_call.1} parent=0
    _
  %s5 = ssub.s32 1, %s3
  %s6 = scalar_select 0, %s5, %s3
  $region1: #{tpu_custom_call.1} parent=0
    #allocation2 [shape = 'u8[49152]{0}', space=vmem, size = 0xc000, scoped, tag = 'input window, operand 0, single buffered']
    #allocation3 [shape = 's32[1]{0}', space=sflag, size = 0x4, scoped, tag = 'scoped memory for tpu_custom_call.1']
    #allocation4 [shape = 's32[1]{0}', space=sflag, size = 0x4, scoped, tag = 'scoped memory for tpu_custom_call.1']
    #allocation5 [shape = 'u8[16384]{0}', space=vmem, size = 0x4000, scoped, tag = 'input window, operand 1, single buffered']
    #allocation6 [shape = 's32[1]{0}', space=sflag, size = 0x4, scoped, tag = 'scoped memory for tpu_custom_call.1']
    #allocation7 [shape = 'u8[512]{0}', space=smem, size = 0x200, scoped, tag = 'output window, operand 0, single buffered']
    %7 = vsyncpa [#allocation3], 0
    %8 = vsyncpa [#allocation6], 0
    %9 = vsyncpa [#allocation4], 0
    // Predicated region
    $region2: #{tpu_custom_call.1} parent=1 // pred_check
      _
    $region3: #{tpu_custom_call.1} parent=1 // pred_check_branch
      %11 = sbr.rel (0) target = $region5
    $region4: #{tpu_custom_call.1} parent=1 // pred_region
      %s13 = ssub.s32 1536, 1536
      %14 = vsyncadd [#allocation3], %s13
      %s15 = sshll.u32 [#allocation2], 4
      %s16 = int_to_ptr.vmem [resolvable:$true] %s15
      %21 = dma.hbm_to_vmem [thread:$0]  %s0, 1536, %s16, [#allocation3], 128, 128, 8
    $region5: #{tpu_custom_call.1} parent=1 // pred_fallthru
      _
    // Predicated region
    $region6: #{tpu_custom_call.1} parent=1 // pred_check
      _
    $region7: #{tpu_custom_call.1} parent=1 // pred_check_branch
      %23 = sbr.rel (0) target = $region9
    $region8: #{tpu_custom_call.1} parent=1 // pred_region
      %s25 = ssub.s32 512, 512
      %26 = vsyncadd [#allocation6], %s25
      %s27 = sshll.u32 [#allocation5], 4
      %s28 = int_to_ptr.vmem [resolvable:$true] %s27
      %33 = dma.hbm_to_vmem [thread:$0]  %s1, 512, %s28, [#allocation6], 128, 128, 8
    $region9: #{tpu_custom_call.1} parent=1 // pred_fallthru
      _
    // Predicated region
    $region10: #{tpu_custom_call.1} parent=1 // pred_check
      _
    $region11: #{tpu_custom_call.1} parent=1 // pred_check_branch
      %35 = sbr.rel (0) target = $region13
    $region12: #{tpu_custom_call.1} parent=1 // pred_region
      %36 = dma.done [#allocation3], 1536
    $region13: #{tpu_custom_call.1} parent=1 // pred_fallthru
      _
    // Predicated region
    $region14: #{tpu_custom_call.1} parent=1 // pred_check
      _
    $region15: #{tpu_custom_call.1} parent=1 // pred_check_branch
      %38 = sbr.rel (0) target = $region17
    $region16: #{tpu_custom_call.1} parent=1 // pred_region
      %39 = dma.done [#allocation6], 512
    $region17: #{tpu_custom_call.1} parent=1 // pred_fallthru
      _
    %v40 = vld [vmem:[#allocation2] sm:$0xff]
    %v41 = vld [vmem:[#allocation2 + $0x8] sm:$0xff]
    %v42 = vld [vmem:[#allocation2 + $0x10] sm:$0xff]
    %v43 = vld [vmem:[#allocation2 + $0x18] sm:$0xff]
    %v44 = vld [vmem:[#allocation2 + $0x20] sm:$0xff]
    %v45 = vld [vmem:[#allocation2 + $0x28] sm:$0xff]
    %v46 = vld [vmem:[#allocation2 + $0x30] sm:$0xff]
    %v47 = vld [vmem:[#allocation2 + $0x38] sm:$0xff]
    %v48 = vld [vmem:[#allocation2 + $0x40] sm:$0xff]
    %v49 = vld [vmem:[#allocation2 + $0x48] sm:$0xff]
    %v50 = vld [vmem:[#allocation2 + $0x50] sm:$0xff]
    %v51 = vld [vmem:[#allocation2 + $0x58] sm:$0xff]
    %v52 = vld [vmem:[#allocation5] sm:$0xff]
    %v53 = vld [vmem:[#allocation5 + $0x8] sm:$0xff]
    %v54 = vld [vmem:[#allocation5 + $0x10] sm:$0xff]
    %v55 = vld [vmem:[#allocation5 + $0x18] sm:$0xff]
    %v56 = vmul.f32 %v40, 0.2989
    %v57 = vmul.f32 %v41, 0.2989
    %v58 = vmul.f32 %v46, 0.2989
    %v59 = vmul.f32 %v47, 0.2989
    %v60 = vmul.f32 %v42, 0.587
    %v61 = vmul.f32 %v43, 0.587
    %v62 = vmul.f32 %v48, 0.587
    %v63 = vmul.f32 %v49, 0.587
    %v64 = vadd.f32 %v56, %v60
    %v65 = vadd.f32 %v57, %v61
    %v66 = vadd.f32 %v58, %v62
    %v67 = vadd.f32 %v59, %v63
    %v68 = vmul.f32 %v44, 0.114
    %v69 = vmul.f32 %v45, 0.114
    %v70 = vmul.f32 %v50, 0.114
    %v71 = vmul.f32 %v51, 0.114
    %v72 = vadd.f32 %v64, %v68
    %v73 = vadd.f32 %v65, %v69
    %v74 = vadd.f32 %v66, %v70
    %v75 = vadd.f32 %v67, %v71
    %v76 = vlaneseq
    %v77 = vshrl.u32 %v76, 7
    %v78 = vadd.s32 %v77, 8
    %v79 = vlaneseq
    %v80 = vand.u32 %v79, 127
    %vm81 = vcmp.ge.s32.totalorder %v77, 1
    %vm82 = vcmp.ge.s32.totalorder %v78, 1
    %vm83 = vcmp.le.s32.totalorder %v77, 14
    %vm84 = vcmp.le.s32.totalorder %v78, 14
    %vm85 = vcmp.ge.s32.totalorder %v80, 1
    %vm86 = vcmp.le.s32.totalorder %v80, 126
    %v87 = vrot.slane %v72, 7
    %v88 = vrot.slane %v74, 7
    %v89 = vrot.slane %v73, 7
    %v90 = vrot.slane %v75, 7
    %vm91 = vcmp.lt.s32.totalorder %v77, 1
    %v92 = vsel %vm91, %v87, %v89
    %v93 = vsel %vm91, %v88, %v90
    %v94 = vsel %vm91, %v89, %v87
    %v95 = vsel %vm91, %v90, %v88
    %v96 = vsel %vm81, %v94, 0.0
    %v97 = vsel %vm82, %v92, 0.0
    %v98 = vsel %vm81, %v95, 0.0
    %v99 = vsel %vm82, %v93, 0.0
    %v100 = vmul.f32 %v72, 2.0
    %v101 = vmul.f32 %v73, 2.0
    %v102 = vmul.f32 %v74, 2.0
    %v103 = vmul.f32 %v75, 2.0
    %v104 = vadd.f32 %v96, %v100
    %v105 = vadd.f32 %v97, %v101
    %v106 = vadd.f32 %v98, %v102
    %v107 = vadd.f32 %v99, %v103
    %v108 = vrot.slane %v72, 1
    %v109 = vrot.slane %v74, 1
    %v110 = vrot.slane %v73, 1
    %v111 = vrot.slane %v75, 1
    %vm112 = vcmp.lt.s32.totalorder %v77, 7
    %v113 = vsel %vm112, %v108, %v110
    %v114 = vsel %vm112, %v109, %v111
    %v115 = vsel %vm112, %v110, %v108
    %v116 = vsel %vm112, %v111, %v109
    %v117 = vsel %vm83, %v113, 0.0
    %v118 = vsel %vm84, %v115, 0.0
    %v119 = vsel %vm83, %v114, 0.0
    %v120 = vsel %vm84, %v116, 0.0
    %v121 = vadd.f32 %v104, %v117
    %v122 = vadd.f32 %v105, %v118
    %v123 = vadd.f32 %v106, %v119
    %v124 = vadd.f32 %v107, %v120
    %125 = vrot.lane.b32.xlu0 %v72, 1
    %v126 = vpop.permute.xlu0 %125
    %127 = vrot.lane.b32.xlu0 %v73, 1
    %v128 = vpop.permute.xlu0 %127
    %129 = vrot.lane.b32.xlu0 %v74, 1
    %v130 = vpop.permute.xlu0 %129
    %131 = vrot.lane.b32.xlu0 %v75, 1
    %v132 = vpop.permute.xlu0 %131
    %v133 = vsel %vm85, %v126, 0.0
    %v134 = vsel %vm85, %v128, 0.0
    %v135 = vsel %vm85, %v130, 0.0
    %v136 = vsel %vm85, %v132, 0.0
    %v137 = vadd.f32 %v133, %v100
    %v138 = vadd.f32 %v134, %v101
    %v139 = vadd.f32 %v135, %v102
    %v140 = vadd.f32 %v136, %v103
    %141 = vrot.lane.b32.xlu0 %v72, 127
    %v142 = vpop.permute.xlu0 %141
    %143 = vrot.lane.b32.xlu0 %v73, 127
    %v144 = vpop.permute.xlu0 %143
    %145 = vrot.lane.b32.xlu0 %v74, 127
    %v146 = vpop.permute.xlu0 %145
    %147 = vrot.lane.b32.xlu0 %v75, 127
    %v148 = vpop.permute.xlu0 %147
    %v149 = vsel %vm86, %v142, 0.0
    %v150 = vsel %vm86, %v144, 0.0
    %v151 = vsel %vm86, %v146, 0.0
    %v152 = vsel %vm86, %v148, 0.0
    %v153 = vadd.f32 %v137, %v149
    %v154 = vadd.f32 %v138, %v150
    %v155 = vadd.f32 %v139, %v151
    %v156 = vadd.f32 %v140, %v152
    %157 = vrot.lane.b32.xlu0 %v121, 127
    %v158 = vpop.permute.xlu0 %157
    %159 = vrot.lane.b32.xlu0 %v122, 127
    %v160 = vpop.permute.xlu0 %159
    %161 = vrot.lane.b32.xlu0 %v123, 127
    %v162 = vpop.permute.xlu0 %161
    %163 = vrot.lane.b32.xlu0 %v124, 127
    %v164 = vpop.permute.xlu0 %163
    %v165 = vsel %vm86, %v158, 0.0
    %v166 = vsel %vm86, %v160, 0.0
    %v167 = vsel %vm86, %v162, 0.0
    %v168 = vsel %vm86, %v164, 0.0
    %169 = vrot.lane.b32.xlu0 %v121, 1
    %v170 = vpop.permute.xlu0 %169
    %171 = vrot.lane.b32.xlu0 %v122, 1
    %v172 = vpop.permute.xlu0 %171
    %173 = vrot.lane.b32.xlu0 %v123, 1
    %v174 = vpop.permute.xlu0 %173
    %175 = vrot.lane.b32.xlu0 %v124, 1
    %v176 = vpop.permute.xlu0 %175
    %v177 = vsel %vm85, %v170, 0.0
    %v178 = vsel %vm85, %v172, 0.0
    %v179 = vsel %vm85, %v174, 0.0
    %v180 = vsel %vm85, %v176, 0.0
    %v181 = vsub.f32 %v165, %v177
    %v182 = vsub.f32 %v166, %v178
    %v183 = vsub.f32 %v167, %v179
    %v184 = vsub.f32 %v168, %v180
    %v185 = vrot.slane %v153, 1
    %v186 = vrot.slane %v155, 1
    %v187 = vrot.slane %v154, 1
    %v188 = vrot.slane %v156, 1
    %v189 = vsel %vm112, %v185, %v187
    %v190 = vsel %vm112, %v186, %v188
    %v191 = vsel %vm112, %v187, %v185
    %v192 = vsel %vm112, %v188, %v186
    %v193 = vsel %vm83, %v189, 0.0
    %v194 = vsel %vm84, %v191, 0.0
    %v195 = vsel %vm83, %v190, 0.0
    %v196 = vsel %vm84, %v192, 0.0
    %v197 = vrot.slane %v153, 7
    %v198 = vrot.slane %v155, 7
    %v199 = vrot.slane %v154, 7
    %v200 = vrot.slane %v156, 7
    %v201 = vsel %vm91, %v197, %v199
    %v202 = vsel %vm91, %v198, %v200
    %v203 = vsel %vm91, %v199, %v197
    %v204 = vsel %vm91, %v200, %v198
    %v205 = vsel %vm81, %v203, 0.0
    %v206 = vsel %vm82, %v201, 0.0
    %v207 = vsel %vm81, %v204, 0.0
    %v208 = vsel %vm82, %v202, 0.0
    %v209 = vsub.f32 %v193, %v205
    %v210 = vsub.f32 %v194, %v206
    %v211 = vsub.f32 %v195, %v207
    %v212 = vsub.f32 %v196, %v208
    %v213 = vmul.f32 %v181, %v181
    %v214 = vmul.f32 %v182, %v182
    %v215 = vmul.f32 %v183, %v183
    %v216 = vmul.f32 %v184, %v184
    %v217 = vmul.f32 %v209, %v209
    %v218 = vmul.f32 %v210, %v210
    %v219 = vmul.f32 %v211, %v211
    %v220 = vmul.f32 %v212, %v212
    %v221 = vadd.f32 %v213, %v217
    %v222 = vadd.f32 %v214, %v218
    %v223 = vadd.f32 %v215, %v219
    %v224 = vadd.f32 %v216, %v220
    %vm225 = vcmp.gt.f32.partialorder %v221, 0.01
    %vm226 = vcmp.gt.f32.partialorder %v222, 0.01
    %vm227 = vcmp.gt.f32.partialorder %v223, 0.01
    %vm228 = vcmp.gt.f32.partialorder %v224, 0.01
    %v229 = vsub.f32 1.0, %v52
    %v230 = vsub.f32 1.0, %v53
    %v231 = vsub.f32 1.0, %v54
    %v232 = vsub.f32 1.0, %v55
    %v233 = vadd.f32 %v229, 0.3132617
    %v234 = vadd.f32 %v230, 0.3132617
    %v235 = vadd.f32 %v231, 0.3132617
    %v236 = vadd.f32 %v232, 0.3132617
    %v237 = vsel %vm225, %v233, 0.6931472
    %v238 = vsel %vm226, %v234, 0.6931472
    %v239 = vsel %vm227, %v235, 0.6931472
    %v240 = vsel %vm228, %v236, 0.6931472
    %v241 = vadd.f32 %v237, %v238
    %v242 = vadd.f32 %v241, %v239
    %v243 = vadd.f32 %v242, %v240
    %244 = vadd.xlane.f32.xlu0 %v243
    %v245 = vpop.xlane.xlu0 %244
    %v246 = vrot.slane %v245, 4
    %v247 = vadd.f32 %v245, %v246
    %v248 = vrot.slane %v247, 2
    %v249 = vadd.f32 %v247, %v248
    %v250 = vrot.slane %v249, 1
    %v251 = vadd.f32 %v249, %v250
    %s252 = vtos %v251
    %s253 = scalar_lea.smem [#allocation7], 0
    %254 = sst [smem:[%s253]] %s252
    // Predicated region
    $region18: #{tpu_custom_call.1} parent=1 // pred_check
      _
    $region19: #{tpu_custom_call.1} parent=1 // pred_check_branch
      %256 = sbr.rel (0) target = $region21
    $region20: #{tpu_custom_call.1} parent=1 // pred_region
      %s258 = ssub.s32 16, 16
      %259 = vsyncadd [#allocation4], %s258
      %262 = dma.smem_to_hbm [#allocation7], 16, %s2, [#allocation4]
    $region21: #{tpu_custom_call.1} parent=1 // pred_fallthru
      _
    // Predicated region
    $region22: #{tpu_custom_call.1} parent=1 // pred_check
      _
    $region23: #{tpu_custom_call.1} parent=1 // pred_check_branch
      %264 = sbr.rel (0) target = $region25
    $region24: #{tpu_custom_call.1} parent=1 // pred_region
      %265 = dma.done [#allocation4], 16
    $region25: #{tpu_custom_call.1} parent=1 // pred_fallthru
      _
    %266 = sfence
    %267 = vsyncpa [#allocation3], 1
    %268 = vsyncpa [#allocation6], 1
    %269 = vsyncpa [#allocation4], 1

</llo_original>
